<compile_context>
chip_gen: v7x
topology: tpu7x:2x2x1
jax: 0.10.0
libtpu: 0.0.40
codegen_flags: <defaults>
</compile_context>

<pallas_src>
import jax
import jax.numpy as jnp
from jax.experimental import pallas as pl
from jax.experimental.pallas import tpu as pltpu


SIZE_IN = 28 * 28          # 784
SIZE_HIDDEN = 100
SIZE_OUT = 10
HP = 128                   # lane-dense padded width (hidden AND logits blocks)
N_BLOCKS = 5               # z0 | z2 | z4 | z6 | z8
SLAB_W = N_BLOCKS * HP     # 640
TB_MAX = 1024              # cap chosen for v7x (64 MiB VMEM, 2 TCs); fine on v5e/v6e too


def _round_up(n, m):
    return ((n + m - 1) // m) * m


def _mlp_kernel(x_ref,
                w0_ref, b0_ref, w1_ref, b1_ref, w2_ref, b2_ref,
                w3_ref, b3_ref, w4_ref, b4_ref,
                out_ref):
    """One batch tile: 5 matmuls, ReLUs in-register, single lane-dense output slab."""
    h = x_ref[...]                                           # (TB, 784)
    w_refs = (w0_ref, w1_ref, w2_ref, w3_ref, w4_ref)
    b_refs = (b0_ref, b1_ref, b2_ref, b3_ref, b4_ref)
    for k in range(N_BLOCKS):                                # unrolled at trace time
        z = jnp.dot(h, w_refs[k][...],
                    preferred_element_type=jnp.float32) + b_refs[k][...]   # (TB, 128)
        out_ref[:, k * HP:(k + 1) * HP] = z                  # 128-aligned static slice
        if k < N_BLOCKS - 1:
            h = jnp.maximum(z, 0.0)                          # ReLU stays in-register


def prepare_params(params):
    """One-time glue: transpose to (in, out) and zero-pad every output width to 128.

    Padding is numerically exact: padded hidden columns get zero weights & bias, so the
    padded activations are ReLU(0)=0 and contribute nothing downstream; padded logit
    columns are never read (wrapper slices the first 10)."""
    def pad_to(wt, rows, cols):
        return jnp.pad(wt, ((0, rows - wt.shape[0]), (0, cols - wt.shape[1])))

    def pad_b(b):
        return jnp.pad(b, (0, HP - b.shape[0])).reshape(1, HP)

    (w0, b0), (w1, b1), (w2, b2), (w3, b3), (w4, b4) = params
    return (pad_to(w0.T, SIZE_IN, HP), pad_b(b0),    # (784, 128), (1, 128)
            pad_to(w1.T, HP, HP),      pad_b(b1),    # (128, 128)
            pad_to(w2.T, HP, HP),      pad_b(b2),
            pad_to(w3.T, HP, HP),      pad_b(b3),
            pad_to(w4.T, HP, HP),      pad_b(b4))    # logits padded 10 -> 128


@jax.jit
def pt_mlp_forward(x, y, prepared):
    """x: (B, 784) f32, y: (B,) int labels, prepared: prepare_params(...) output.

    Returns dict z0..z9 matching PT_MLP.forward (z9 is the scalar CE loss)."""
    B = x.shape[0]

    # Batch tile: as large as possible (amortize per-step overhead), but always >= 2 tiles
    # when B > 8 so both v7x TensorCores get work via dimension_semantics=("parallel",).
    TB = min(TB_MAX, max(8, _round_up(-(-B // 2), 8)))
    B_pad = _round_up(B, TB)
    n_tiles = B_pad // TB

    x_p = jnp.pad(x, ((0, B_pad - B), (0, 0)))

    vmem = pltpu.MemorySpace.VMEM

    def row_spec(feat):   # batch-tiled, streamed HBM<->VMEM
        return pl.BlockSpec((TB, feat), lambda i: (i, 0), memory_space=vmem)

    def res_spec(shape):  # constant index map -> VMEM-resident across the whole grid
        return pl.BlockSpec(shape, lambda i: (0, 0), memory_space=vmem)

    in_specs = [
        row_spec(SIZE_IN),                            # x (kept 784-wide: full, contiguous)
        res_spec((SIZE_IN, HP)), res_spec((1, HP)),   # fc0
        res_spec((HP, HP)),      res_spec((1, HP)),   # fc1
        res_spec((HP, HP)),      res_spec((1, HP)),   # fc2
        res_spec((HP, HP)),      res_spec((1, HP)),   # fc3
        res_spec((HP, HP)),      res_spec((1, HP)),   # fc4 (padded to 128 logits)
    ]
    out_specs = row_spec(SLAB_W)
    out_shape = jax.ShapeDtypeStruct((B_pad, SLAB_W), jnp.float32)

    weight_elems = (SIZE_IN * HP + 4 * HP * HP + 5 * HP)
    flops = 2 * B_pad * (SIZE_IN * HP + 4 * HP * HP)
    bytes_accessed = 4 * (B_pad * SIZE_IN + B_pad * SLAB_W + weight_elems)
    cost = pl.CostEstimate(flops=flops, transcendentals=0,
                           bytes_accessed=bytes_accessed)

    slab = pl.pallas_call(
        _mlp_kernel,
        grid=(n_tiles,),
        in_specs=in_specs,
        out_specs=out_specs,
        out_shape=out_shape,
        compiler_params=pltpu.CompilerParams(
            dimension_semantics=("parallel",),
            vmem_limit_bytes=48 * 1024 * 1024,
        ),
        cost_estimate=cost,
    )(x_p, *prepared)

    # Endpoint reconstruction (required by the module contract: z0..z7 are (B,100),
    # z8 is (B,10)).  ReLU endpoints are a trivial fused jnp.maximum on the sliced tensors.
    z0 = slab[:B, 0 * HP:0 * HP + SIZE_HIDDEN]
    z2 = slab[:B, 1 * HP:1 * HP + SIZE_HIDDEN]
    z4 = slab[:B, 2 * HP:2 * HP + SIZE_HIDDEN]
    z6 = slab[:B, 3 * HP:3 * HP + SIZE_HIDDEN]
    z8 = slab[:B, 4 * HP:4 * HP + SIZE_OUT]

    # Cross-entropy in the wrapper (z8 is tiny: (B, 10)).
    lse = jax.scipy.special.logsumexp(z8, axis=-1)
    picked = jnp.take_along_axis(z8, y[:, None].astype(jnp.int32), axis=-1)[:, 0]
    z9 = jnp.mean(lse - picked)

    return {
        "z0": z0, "z1": jnp.maximum(z0, 0.0),
        "z2": z2, "z3": jnp.maximum(z2, 0.0),
        "z4": z4, "z5": jnp.maximum(z4, 0.0),
        "z6": z6, "z7": jnp.maximum(z6, 0.0),
        "z8": z8,
        "z9": z9,
    }


def init_params(key, size_hidden=SIZE_HIDDEN, size_out=SIZE_OUT):
    """Deterministic init mimicking nn.Linear: U(-1/sqrt(fan_in), 1/sqrt(fan_in))."""
    dims = [(SIZE_IN, size_hidden), (size_hidden, size_hidden),
            (size_hidden, size_hidden), (size_hidden, size_hidden),
            (size_hidden, size_out)]
    params = []
    for (fan_in, fan_out) in dims:
        key, kw, kb = jax.random.split(key, 3)
        bound = 1.0 / jnp.sqrt(float(fan_in))
        w = jax.random.uniform(kw, (fan_out, fan_in), jnp.float32, -bound, bound)
        b = jax.random.uniform(kb, (fan_out,), jnp.float32, -bound, bound)
        params.append((w, b))
    return tuple(params)


def _reference_forward(x, y, params):
    h = x
    zs = []
    for i, (w, b) in enumerate(params):
        z = h @ w.T + b
        zs.append(z)
        if i < len(params) - 1:
            h = jnp.maximum(z, 0.0)
            zs.append(h)
    logits = zs[-1]
    lse = jax.scipy.special.logsumexp(logits, axis=-1)
    picked = jnp.take_along_axis(logits, y[:, None], axis=-1)[:, 0]
    loss = jnp.mean(lse - picked)
    return zs, loss


if __name__ == "__main__":
    key = jax.random.PRNGKey(0)
    k_param, k_x, k_y = jax.random.split(key, 3)

    B = 8
    params = init_params(k_param)
    prepared = prepare_params(params)     # one-time transpose + pad (not per-call)
    x = jax.random.normal(k_x, (B, SIZE_IN), jnp.float32)
    y = jax.random.randint(k_y, (B,), 0, SIZE_OUT, jnp.int32)

    endpoints = pt_mlp_forward(x, y, prepared)
    jax.block_until_ready(endpoints)

    # Sanity check against a plain-JAX reference.
    ref_zs, ref_loss = _reference_forward(x, y, params)
    for i in range(9):
        assert jnp.allclose(endpoints[f"z{i}"], ref_zs[i], atol=1e-4, rtol=1e-4), f"z{i}"
    assert jnp.allclose(endpoints["z9"], ref_loss, atol=1e-4, rtol=1e-4)

    print("KERNEL_OK")
</pallas_src>

<mosaic_0001>
module attributes {stable_mosaic.version = 11 : i64} {
  func.func @_mlp_kernel(%arg0: i32, %arg1: memref<8x784xf32, #tpu.memory_space<vmem>>, %arg2: memref<784x128xf32, #tpu.memory_space<vmem>>, %arg3: memref<1x128xf32, #tpu.memory_space<vmem>>, %arg4: memref<128x128xf32, #tpu.memory_space<vmem>>, %arg5: memref<1x128xf32, #tpu.memory_space<vmem>>, %arg6: memref<128x128xf32, #tpu.memory_space<vmem>>, %arg7: memref<1x128xf32, #tpu.memory_space<vmem>>, %arg8: memref<128x128xf32, #tpu.memory_space<vmem>>, %arg9: memref<1x128xf32, #tpu.memory_space<vmem>>, %arg10: memref<128x128xf32, #tpu.memory_space<vmem>>, %arg11: memref<1x128xf32, #tpu.memory_space<vmem>>, %arg12: memref<8x640xf32, #tpu.memory_space<vmem>>) attributes {dimension_semantics = [#tpu.dimension_semantics<parallel>], iteration_bounds = array<i64: 1>, scalar_prefetch = 0 : i64, scratch_operands = 0 : i64, tpu.core_type = #tpu.core_type<tc>, window_params = [{transform_indices = @transform_0, window_bounds = array<i64: 8, 784>}, {pipeline_mode = #tpu.pipeline_mode<synchronous>, transform_indices = @transform_1, window_bounds = array<i64: 784, 128>}, {pipeline_mode = #tpu.pipeline_mode<synchronous>, transform_indices = @transform_2, window_bounds = array<i64: 1, 128>}, {pipeline_mode = #tpu.pipeline_mode<synchronous>, transform_indices = @transform_3, window_bounds = array<i64: 128, 128>}, {pipeline_mode = #tpu.pipeline_mode<synchronous>, transform_indices = @transform_4, window_bounds = array<i64: 1, 128>}, {pipeline_mode = #tpu.pipeline_mode<synchronous>, transform_indices = @transform_5, window_bounds = array<i64: 128, 128>}, {pipeline_mode = #tpu.pipeline_mode<synchronous>, transform_indices = @transform_6, window_bounds = array<i64: 1, 128>}, {pipeline_mode = #tpu.pipeline_mode<synchronous>, transform_indices = @transform_7, window_bounds = array<i64: 128, 128>}, {pipeline_mode = #tpu.pipeline_mode<synchronous>, transform_indices = @transform_8, window_bounds = array<i64: 1, 128>}, {pipeline_mode = #tpu.pipeline_mode<synchronous>, transform_indices = @transform_9, window_bounds = array<i64: 128, 128>}, {pipeline_mode = #tpu.pipeline_mode<synchronous>, transform_indices = @transform_10, window_bounds = array<i64: 1, 128>}, {transform_indices = @transform_11, window_bounds = array<i64: 8, 640>}]} {
    %c0 = arith.constant 0 : index
    %c0_0 = arith.constant 0 : index
    %0 = vector.load %arg1[%c0, %c0_0] : memref<8x784xf32, #tpu.memory_space<vmem>>, vector<8x784xf32>
    %c0_1 = arith.constant 0 : index
    %c0_2 = arith.constant 0 : index
    %1 = vector.load %arg2[%c0_1, %c0_2] : memref<784x128xf32, #tpu.memory_space<vmem>>, vector<784x128xf32>
    %cst = arith.constant dense<0.000000e+00> : vector<8x128xf32>
    %2 = tpu.matmul %0, %1, %cst {dimension_numbers = #tpu.dot_dimension_numbers<[1], [0], [0], [1], [0, 0, 1, 1], [], []>} : vector<8x784xf32>, vector<784x128xf32>, vector<8x128xf32> -> vector<8x128xf32>
    %c0_3 = arith.constant 0 : index
    %c0_4 = arith.constant 0 : index
    %3 = vector.load %arg3[%c0_3, %c0_4] : memref<1x128xf32, #tpu.memory_space<vmem>>, vector<1x128xf32>
    %4 = vector.broadcast %3 : vector<1x128xf32> to vector<8x128xf32>
    %5 = arith.addf %2, %4 : vector<8x128xf32>
    %c0_5 = arith.constant 0 : index
    %c0_6 = arith.constant 0 : index
    %6 = vector.load %arg12[%c0_5, %c0_6] : memref<8x640xf32, #tpu.memory_space<vmem>>, vector<8x128xf32>
    tpu.vector_store %arg12[%c0_5, %c0_6], %5 {strides = array<i32>} : memref<8x640xf32, #tpu.memory_space<vmem>>, vector<8x128xf32>,
    %cst_7 = arith.constant 0.000000e+00 : f32
    %7 = vector.broadcast %cst_7 : f32 to vector<8x128xf32>
    %8 = arith.maximumf %5, %7 : vector<8x128xf32>
    %c0_8 = arith.constant 0 : index
    %c0_9 = arith.constant 0 : index
    %9 = vector.load %arg4[%c0_8, %c0_9] : memref<128x128xf32, #tpu.memory_space<vmem>>, vector<128x128xf32>
    %cst_10 = arith.constant dense<0.000000e+00> : vector<8x128xf32>
    %10 = tpu.matmul %8, %9, %cst_10 {dimension_numbers = #tpu.dot_dimension_numbers<[1], [0], [0], [1], [0, 0, 1, 1], [], []>} : vector<8x128xf32>, vector<128x128xf32>, vector<8x128xf32> -> vector<8x128xf32>
    %c0_11 = arith.constant 0 : index
    %c0_12 = arith.constant 0 : index
    %11 = vector.load %arg5[%c0_11, %c0_12] : memref<1x128xf32, #tpu.memory_space<vmem>>, vector<1x128xf32>
    %12 = vector.broadcast %11 : vector<1x128xf32> to vector<8x128xf32>
    %13 = arith.addf %10, %12 : vector<8x128xf32>
    %c0_13 = arith.constant 0 : index
    %c128 = arith.constant 128 : index
    %14 = vector.load %arg12[%c0_13, %c128] : memref<8x640xf32, #tpu.memory_space<vmem>>, vector<8x128xf32>
    tpu.vector_store %arg12[%c0_13, %c128], %13 {strides = array<i32>} : memref<8x640xf32, #tpu.memory_space<vmem>>, vector<8x128xf32>,
    %cst_14 = arith.constant 0.000000e+00 : f32
    %15 = vector.broadcast %cst_14 : f32 to vector<8x128xf32>
    %16 = arith.maximumf %13, %15 : vector<8x128xf32>
    %c0_15 = arith.constant 0 : index
    %c0_16 = arith.constant 0 : index
    %17 = vector.load %arg6[%c0_15, %c0_16] : memref<128x128xf32, #tpu.memory_space<vmem>>, vector<128x128xf32>
    %cst_17 = arith.constant dense<0.000000e+00> : vector<8x128xf32>
    %18 = tpu.matmul %16, %17, %cst_17 {dimension_numbers = #tpu.dot_dimension_numbers<[1], [0], [0], [1], [0, 0, 1, 1], [], []>} : vector<8x128xf32>, vector<128x128xf32>, vector<8x128xf32> -> vector<8x128xf32>
    %c0_18 = arith.constant 0 : index
    %c0_19 = arith.constant 0 : index
    %19 = vector.load %arg7[%c0_18, %c0_19] : memref<1x128xf32, #tpu.memory_space<vmem>>, vector<1x128xf32>
    %20 = vector.broadcast %19 : vector<1x128xf32> to vector<8x128xf32>
    %21 = arith.addf %18, %20 : vector<8x128xf32>
    %c0_20 = arith.constant 0 : index
    %c256 = arith.constant 256 : index
    %22 = vector.load %arg12[%c0_20, %c256] : memref<8x640xf32, #tpu.memory_space<vmem>>, vector<8x128xf32>
    tpu.vector_store %arg12[%c0_20, %c256], %21 {strides = array<i32>} : memref<8x640xf32, #tpu.memory_space<vmem>>, vector<8x128xf32>,
    %cst_21 = arith.constant 0.000000e+00 : f32
    %23 = vector.broadcast %cst_21 : f32 to vector<8x128xf32>
    %24 = arith.maximumf %21, %23 : vector<8x128xf32>
    %c0_22 = arith.constant 0 : index
    %c0_23 = arith.constant 0 : index
    %25 = vector.load %arg8[%c0_22, %c0_23] : memref<128x128xf32, #tpu.memory_space<vmem>>, vector<128x128xf32>
    %cst_24 = arith.constant dense<0.000000e+00> : vector<8x128xf32>
    %26 = tpu.matmul %24, %25, %cst_24 {dimension_numbers = #tpu.dot_dimension_numbers<[1], [0], [0], [1], [0, 0, 1, 1], [], []>} : vector<8x128xf32>, vector<128x128xf32>, vector<8x128xf32> -> vector<8x128xf32>
    %c0_25 = arith.constant 0 : index
    %c0_26 = arith.constant 0 : index
    %27 = vector.load %arg9[%c0_25, %c0_26] : memref<1x128xf32, #tpu.memory_space<vmem>>, vector<1x128xf32>
    %28 = vector.broadcast %27 : vector<1x128xf32> to vector<8x128xf32>
    %29 = arith.addf %26, %28 : vector<8x128xf32>
    %c0_27 = arith.constant 0 : index
    %c384 = arith.constant 384 : index
    %30 = vector.load %arg12[%c0_27, %c384] : memref<8x640xf32, #tpu.memory_space<vmem>>, vector<8x128xf32>
    tpu.vector_store %arg12[%c0_27, %c384], %29 {strides = array<i32>} : memref<8x640xf32, #tpu.memory_space<vmem>>, vector<8x128xf32>,
    %cst_28 = arith.constant 0.000000e+00 : f32
    %31 = vector.broadcast %cst_28 : f32 to vector<8x128xf32>
    %32 = arith.maximumf %29, %31 : vector<8x128xf32>
    %c0_29 = arith.constant 0 : index
    %c0_30 = arith.constant 0 : index
    %33 = vector.load %arg10[%c0_29, %c0_30] : memref<128x128xf32, #tpu.memory_space<vmem>>, vector<128x128xf32>
    %cst_31 = arith.constant dense<0.000000e+00> : vector<8x128xf32>
    %34 = tpu.matmul %32, %33, %cst_31 {dimension_numbers = #tpu.dot_dimension_numbers<[1], [0], [0], [1], [0, 0, 1, 1], [], []>} : vector<8x128xf32>, vector<128x128xf32>, vector<8x128xf32> -> vector<8x128xf32>
    %c0_32 = arith.constant 0 : index
    %c0_33 = arith.constant 0 : index
    %35 = vector.load %arg11[%c0_32, %c0_33] : memref<1x128xf32, #tpu.memory_space<vmem>>, vector<1x128xf32>
    %36 = vector.broadcast %35 : vector<1x128xf32> to vector<8x128xf32>
    %37 = arith.addf %34, %36 : vector<8x128xf32>
    %c0_34 = arith.constant 0 : index
    %c512 = arith.constant 512 : index
    %38 = vector.load %arg12[%c0_34, %c512] : memref<8x640xf32, #tpu.memory_space<vmem>>, vector<8x128xf32>
    tpu.vector_store %arg12[%c0_34, %c512], %37 {strides = array<i32>} : memref<8x640xf32, #tpu.memory_space<vmem>>, vector<8x128xf32>,
    return
  }
  func.func @transform_0(%arg0: i32) -> (i32, i32) {
    %c0_i32 = arith.constant 0 : i32
    %c0_i32_0 = arith.constant 0 : i32
    return %arg0, %c0_i32 : i32, i32
  }
  func.func @transform_1(%arg0: i32) -> (i32, i32) {
    %c0_i32 = arith.constant 0 : i32
    %c0_i32_0 = arith.constant 0 : i32
    %c0_i32_1 = arith.constant 0 : i32
    return %c0_i32, %c0_i32_0 : i32, i32
  }
  func.func @transform_2(%arg0: i32) -> (i32, i32) {
    %c0_i32 = arith.constant 0 : i32
    %c0_i32_0 = arith.constant 0 : i32
    %c0_i32_1 = arith.constant 0 : i32
    return %c0_i32, %c0_i32_0 : i32, i32
  }
  func.func @transform_3(%arg0: i32) -> (i32, i32) {
    %c0_i32 = arith.constant 0 : i32
    %c0_i32_0 = arith.constant 0 : i32
    %c0_i32_1 = arith.constant 0 : i32
    return %c0_i32, %c0_i32_0 : i32, i32
  }
  func.func @transform_4(%arg0: i32) -> (i32, i32) {
    %c0_i32 = arith.constant 0 : i32
    %c0_i32_0 = arith.constant 0 : i32
    %c0_i32_1 = arith.constant 0 : i32
    return %c0_i32, %c0_i32_0 : i32, i32
  }
  func.func @transform_5(%arg0: i32) -> (i32, i32) {
    %c0_i32 = arith.constant 0 : i32
    %c0_i32_0 = arith.constant 0 : i32
    %c0_i32_1 = arith.constant 0 : i32
    return %c0_i32, %c0_i32_0 : i32, i32
  }
  func.func @transform_6(%arg0: i32) -> (i32, i32) {
    %c0_i32 = arith.constant 0 : i32
    %c0_i32_0 = arith.constant 0 : i32
    %c0_i32_1 = arith.constant 0 : i32
    return %c0_i32, %c0_i32_0 : i32, i32
  }
  func.func @transform_7(%arg0: i32) -> (i32, i32) {
    %c0_i32 = arith.constant 0 : i32
    %c0_i32_0 = arith.constant 0 : i32
    %c0_i32_1 = arith.constant 0 : i32
    return %c0_i32, %c0_i32_0 : i32, i32
  }
  func.func @transform_8(%arg0: i32) -> (i32, i32) {
    %c0_i32 = arith.constant 0 : i32
    %c0_i32_0 = arith.constant 0 : i32
    %c0_i32_1 = arith.constant 0 : i32
    return %c0_i32, %c0_i32_0 : i32, i32
  }
  func.func @transform_9(%arg0: i32) -> (i32, i32) {
    %c0_i32 = arith.constant 0 : i32
    %c0_i32_0 = arith.constant 0 : i32
    %c0_i32_1 = arith.constant 0 : i32
    return %c0_i32, %c0_i32_0 : i32, i32
  }
  func.func @transform_10(%arg0: i32) -> (i32, i32) {
    %c0_i32 = arith.constant 0 : i32
    %c0_i32_0 = arith.constant 0 : i32
    %c0_i32_1 = arith.constant 0 : i32
    return %c0_i32, %c0_i32_0 : i32, i32
  }
  func.func @transform_11(%arg0: i32) -> (i32, i32) {
    %c0_i32 = arith.constant 0 : i32
    %c0_i32_0 = arith.constant 0 : i32
    return %arg0, %c0_i32 : i32, i32
  }
}

</mosaic_0001>

<llo_original>
// kernel: pt_mlp_forward.1
$region0: #{pt_mlp_forward.1}
  #allocation0 [shape = 'u32[]', space=smem, size = 0x4, offset = 0x4, fixed_abs, tag = 'smem constant byte address 0x4 - core index']
  #allocation1 [shape = 'u32[144,128]{1,0:T(1,128)}', space=vmem, size = 0x12000, scoped, tag = 'internal scratch']
  %s0 = inlined_call_operand.hbm [shape: f32[8,784], index: 0, kind: input, shape index: {}]
  %s1 = inlined_call_operand.hbm [shape: f32[784,128], index: 1, kind: input, shape index: {}]
  %s2 = inlined_call_operand.vmem [shape: f32[1,128], index: 2, kind: input, shape index: {}]
  %s3 = inlined_call_operand.hbm [shape: f32[128,128], index: 3, kind: input, shape index: {}]
  %s4 = inlined_call_operand.vmem [shape: f32[1,128], index: 4, kind: input, shape index: {}]
  %s5 = inlined_call_operand.hbm [shape: f32[128,128], index: 5, kind: input, shape index: {}]
  %s6 = inlined_call_operand.vmem [shape: f32[1,128], index: 6, kind: input, shape index: {}]
  %s7 = inlined_call_operand.hbm [shape: f32[128,128], index: 7, kind: input, shape index: {}]
  %s8 = inlined_call_operand.vmem [shape: f32[1,128], index: 8, kind: input, shape index: {}]
  %s9 = inlined_call_operand.hbm [shape: f32[128,128], index: 9, kind: input, shape index: {}]
  %s10 = inlined_call_operand.vmem [shape: f32[1,128], index: 10, kind: input, shape index: {}]
  %s11 = inlined_call_operand.vmem [shape: f32[8,640], index: 11, kind: output, shape index: {}]
  %s12 = sld [smem:[#allocation0]]
  $region78: #{pt_mlp_forward.1} parent=0
    _
  %s14 = ssub.s32 1, %s12
  %s15 = scalar_select 0, %s14, %s12
  $region1: #{pt_mlp_forward.1} parent=0
    #allocation2 [shape = 'u8[28672]{0}', space=vmem, size = 0x7000, scoped, tag = 'input window, operand 0, single buffered']
    #allocation3 [shape = 's32[1]{0}', space=sflag, size = 0x4, scoped, tag = 'scoped memory for pt_mlp_forward.1']
    #allocation4 [shape = 'u8[401408]{0}', space=vmem, size = 0x62000, scoped, tag = 'input window, operand 1, single buffered']
    #allocation5 [shape = 's32[1]{0}', space=sflag, size = 0x4, scoped, tag = 'scoped memory for pt_mlp_forward.1']
    #allocation6 [shape = 'u8[65536]{0}', space=vmem, size = 0x10000, scoped, tag = 'input window, operand 3, single buffered']
    #allocation7 [shape = 'u8[65536]{0}', space=vmem, size = 0x10000, scoped, tag = 'input window, operand 5, single buffered']
    #allocation8 [shape = 's32[1]{0}', space=sflag, size = 0x4, scoped, tag = 'scoped memory for pt_mlp_forward.1']
    #allocation9 [shape = 'u8[65536]{0}', space=vmem, size = 0x10000, scoped, tag = 'input window, operand 7, single buffered']
    #allocation10 [shape = 'u8[65536]{0}', space=vmem, size = 0x10000, scoped, tag = 'input window, operand 9, single buffered']
    #allocation11 [shape = 's32[1]{0}', space=sflag, size = 0x4, scoped, tag = 'scoped memory for pt_mlp_forward.1']
    %16 = vsyncpa [#allocation3], 0
    %17 = vsyncpa [#allocation5], 0
    %18 = vsyncpa [#allocation8], 0
    %19 = vsyncpa [#allocation11], 0
    // Predicated region
    $region2: #{pt_mlp_forward.1} parent=1 // pred_check
      _
    $region3: #{pt_mlp_forward.1} parent=1 // pred_check_branch
      %21 = sbr.rel (0) target = $region5
    $region4: #{pt_mlp_forward.1} parent=1 // pred_region
      %s23 = ssub.s32 896, 896
      %24 = vsyncadd [#allocation3], %s23
      %s26 = sshll.u32 [#allocation2], 4
      %s27 = int_to_ptr.vmem [resolvable:$true] %s26
      %29 = dma.hbm_to_vmem [thread:$0]  %s0, 896, %s27, [#allocation3]
    $region5: #{pt_mlp_forward.1} parent=1 // pred_fallthru
      _
    // Predicated region
    $region6: #{pt_mlp_forward.1} parent=1 // pred_check
      _
    $region7: #{pt_mlp_forward.1} parent=1 // pred_check_branch
      %31 = sbr.rel (0) target = $region9
    $region8: #{pt_mlp_forward.1} parent=1 // pred_region
      %s33 = ssub.s32 12544, 12544
      %34 = vsyncadd [#allocation5], %s33
      %s35 = sshll.u32 [#allocation4], 4
      %s36 = int_to_ptr.vmem [resolvable:$true] %s35
      %41 = dma.hbm_to_vmem [thread:$0]  %s1, 12544, %s36, [#allocation5], 128, 128, 8
    $region9: #{pt_mlp_forward.1} parent=1 // pred_fallthru
      _
    // Predicated region
    $region10: #{pt_mlp_forward.1} parent=1 // pred_check
      _
    $region11: #{pt_mlp_forward.1} parent=1 // pred_check_branch
      %43 = sbr.rel (0) target = $region13
    $region12: #{pt_mlp_forward.1} parent=1 // pred_region
      _
    $region13: #{pt_mlp_forward.1} parent=1 // pred_fallthru
      _
    // Predicated region
    $region14: #{pt_mlp_forward.1} parent=1 // pred_check
      _
    $region15: #{pt_mlp_forward.1} parent=1 // pred_check_branch
      %45 = sbr.rel (0) target = $region17
    $region16: #{pt_mlp_forward.1} parent=1 // pred_region
      %s47 = ssub.s32 2048, 2048
      %48 = vsyncadd [#allocation5], %s47
      %s49 = sshll.u32 [#allocation6], 4
      %s50 = int_to_ptr.vmem [resolvable:$true] %s49
      %55 = dma.hbm_to_vmem [thread:$0]  %s3, 2048, %s50, [#allocation5], 128, 128, 8
    $region17: #{pt_mlp_forward.1} parent=1 // pred_fallthru
      _
    // Predicated region
    $region18: #{pt_mlp_forward.1} parent=1 // pred_check
      _
    $region19: #{pt_mlp_forward.1} parent=1 // pred_check_branch
      %57 = sbr.rel (0) target = $region21
    $region20: #{pt_mlp_forward.1} parent=1 // pred_region
      _
    $region21: #{pt_mlp_forward.1} parent=1 // pred_fallthru
      _
    // Predicated region
    $region22: #{pt_mlp_forward.1} parent=1 // pred_check
      _
    $region23: #{pt_mlp_forward.1} parent=1 // pred_check_branch
      %59 = sbr.rel (0) target = $region25
    $region24: #{pt_mlp_forward.1} parent=1 // pred_region
      %s61 = ssub.s32 2048, 2048
      %62 = vsyncadd [#allocation8], %s61
      %s63 = sshll.u32 [#allocation7], 4
      %s64 = int_to_ptr.vmem [resolvable:$true] %s63
      %69 = dma.hbm_to_vmem [thread:$0]  %s5, 2048, %s64, [#allocation8], 128, 128, 8
    $region25: #{pt_mlp_forward.1} parent=1 // pred_fallthru
      _
    // Predicated region
    $region26: #{pt_mlp_forward.1} parent=1 // pred_check
      _
    $region27: #{pt_mlp_forward.1} parent=1 // pred_check_branch
      %71 = sbr.rel (0) target = $region29
    $region28: #{pt_mlp_forward.1} parent=1 // pred_region
      _
    $region29: #{pt_mlp_forward.1} parent=1 // pred_fallthru
      _
    // Predicated region
    $region30: #{pt_mlp_forward.1} parent=1 // pred_check
      _
    $region31: #{pt_mlp_forward.1} parent=1 // pred_check_branch
      %73 = sbr.rel (0) target = $region33
    $region32: #{pt_mlp_forward.1} parent=1 // pred_region
      %s75 = ssub.s32 2048, 2048
      %76 = vsyncadd [#allocation8], %s75
      %s77 = sshll.u32 [#allocation9], 4
      %s78 = int_to_ptr.vmem [resolvable:$true] %s77
      %83 = dma.hbm_to_vmem [thread:$0]  %s7, 2048, %s78, [#allocation8], 128, 128, 8
    $region33: #{pt_mlp_forward.1} parent=1 // pred_fallthru
      _
    // Predicated region
    $region34: #{pt_mlp_forward.1} parent=1 // pred_check
      _
    $region35: #{pt_mlp_forward.1} parent=1 // pred_check_branch
      %85 = sbr.rel (0) target = $region37
    $region36: #{pt_mlp_forward.1} parent=1 // pred_region
      _
    $region37: #{pt_mlp_forward.1} parent=1 // pred_fallthru
      _
    // Predicated region
    $region38: #{pt_mlp_forward.1} parent=1 // pred_check
      _
    $region39: #{pt_mlp_forward.1} parent=1 // pred_check_branch
      %87 = sbr.rel (0) target = $region41
    $region40: #{pt_mlp_forward.1} parent=1 // pred_region
      %s89 = ssub.s32 2048, 2048
      %90 = vsyncadd [#allocation11], %s89
      %s91 = sshll.u32 [#allocation10], 4
      %s92 = int_to_ptr.vmem [resolvable:$true] %s91
      %97 = dma.hbm_to_vmem [thread:$0]  %s9, 2048, %s92, [#allocation11], 128, 128, 8
    $region41: #{pt_mlp_forward.1} parent=1 // pred_fallthru
      _
    // Predicated region
    $region42: #{pt_mlp_forward.1} parent=1 // pred_check
      _
    $region43: #{pt_mlp_forward.1} parent=1 // pred_check_branch
      %99 = sbr.rel (0) target = $region45
    $region44: #{pt_mlp_forward.1} parent=1 // pred_region
      _
    $region45: #{pt_mlp_forward.1} parent=1 // pred_fallthru
      _
    // Predicated region
    $region46: #{pt_mlp_forward.1} parent=1 // pred_check
      _
    $region47: #{pt_mlp_forward.1} parent=1 // pred_check_branch
      %101 = sbr.rel (0) target = $region49
    $region48: #{pt_mlp_forward.1} parent=1 // pred_region
      %102 = dma.done [#allocation3], 896
    $region49: #{pt_mlp_forward.1} parent=1 // pred_fallthru
      _
    // Predicated region
    $region50: #{pt_mlp_forward.1} parent=1 // pred_check
      _
    $region51: #{pt_mlp_forward.1} parent=1 // pred_check_branch
      %104 = sbr.rel (0) target = $region53
    $region52: #{pt_mlp_forward.1} parent=1 // pred_region
      %105 = dma.done [#allocation5], 12544
    $region53: #{pt_mlp_forward.1} parent=1 // pred_fallthru
      _
    // Predicated region
    $region54: #{pt_mlp_forward.1} parent=1 // pred_check
      _
    $region55: #{pt_mlp_forward.1} parent=1 // pred_check_branch
      %107 = sbr.rel (0) target = $region57
    $region56: #{pt_mlp_forward.1} parent=1 // pred_region
      %108 = dma.done [#allocation5], 2048
    $region57: #{pt_mlp_forward.1} parent=1 // pred_fallthru
      _
    // Predicated region
    $region58: #{pt_mlp_forward.1} parent=1 // pred_check
      _
    $region59: #{pt_mlp_forward.1} parent=1 // pred_check_branch
      %110 = sbr.rel (0) target = $region61
    $region60: #{pt_mlp_forward.1} parent=1 // pred_region
      %111 = dma.done [#allocation8], 2048
    $region61: #{pt_mlp_forward.1} parent=1 // pred_fallthru
      _
    // Predicated region
    $region62: #{pt_mlp_forward.1} parent=1 // pred_check
      _
    $region63: #{pt_mlp_forward.1} parent=1 // pred_check_branch
      %113 = sbr.rel (0) target = $region65
    $region64: #{pt_mlp_forward.1} parent=1 // pred_region
      %114 = dma.done [#allocation8], 2048
    $region65: #{pt_mlp_forward.1} parent=1 // pred_fallthru
      _
    // Predicated region
    $region66: #{pt_mlp_forward.1} parent=1 // pred_check
      _
    $region67: #{pt_mlp_forward.1} parent=1 // pred_check_branch
      %116 = sbr.rel (0) target = $region69
    $region68: #{pt_mlp_forward.1} parent=1 // pred_region
      %117 = dma.done [#allocation11], 2048
    $region69: #{pt_mlp_forward.1} parent=1 // pred_fallthru
      _
    %v118 = vld [vmem:[#allocation2] sm:$0xff]
    %v119 = vld [vmem:[#allocation2 + $0x8] sm:$0xff]
    %v120 = vld [vmem:[#allocation2 + $0x10] sm:$0xff]
    %v121 = vld [vmem:[#allocation2 + $0x18] sm:$0xff]
    %v122 = vld [vmem:[#allocation2 + $0x20] sm:$0xff]
    %v123 = vld [vmem:[#allocation2 + $0x28] sm:$0xff]
    %v124 = vld [vmem:[#allocation2 + $0x30] sm:$0xff]
    %v125 = vld [vmem:[#allocation4] sm:$0xff]
    %v126 = vld [vmem:[#allocation4 + $0x8] sm:$0xff]
    %v127 = vld [vmem:[#allocation4 + $0x10] sm:$0xff]
    %v128 = vld [vmem:[#allocation4 + $0x18] sm:$0xff]
    %v129 = vld [vmem:[#allocation4 + $0x20] sm:$0xff]
    %v130 = vld [vmem:[#allocation4 + $0x28] sm:$0xff]
    %v131 = vld [vmem:[#allocation4 + $0x30] sm:$0xff]
    %v132 = vld [vmem:[#allocation4 + $0x38] sm:$0xff]
    %v133 = vld [vmem:[#allocation4 + $0x40] sm:$0xff]
    %v134 = vld [vmem:[#allocation4 + $0x48] sm:$0xff]
    %v135 = vld [vmem:[#allocation4 + $0x50] sm:$0xff]
    %v136 = vld [vmem:[#allocation4 + $0x58] sm:$0xff]
    %v137 = vld [vmem:[#allocation4 + $0x60] sm:$0xff]
    %v138 = vld [vmem:[#allocation4 + $0x68] sm:$0xff]
    %v139 = vld [vmem:[#allocation4 + $0x70] sm:$0xff]
    %v140 = vld [vmem:[#allocation4 + $0x78] sm:$0xff]
    %v141 = vld [vmem:[#allocation4 + $0x80] sm:$0xff]
    %v142 = vld [vmem:[#allocation4 + $0x88] sm:$0xff]
    %v143 = vld [vmem:[#allocation4 + $0x90] sm:$0xff]
    %v144 = vld [vmem:[#allocation4 + $0x98] sm:$0xff]
    %v145 = vld [vmem:[#allocation4 + $0xa0] sm:$0xff]
    %v146 = vld [vmem:[#allocation4 + $0xa8] sm:$0xff]
    %v147 = vld [vmem:[#allocation4 + $0xb0] sm:$0xff]
    %v148 = vld [vmem:[#allocation4 + $0xb8] sm:$0xff]
    %v149 = vld [vmem:[#allocation4 + $0xc0] sm:$0xff]
    %v150 = vld [vmem:[#allocation4 + $0xc8] sm:$0xff]
    %v151 = vld [vmem:[#allocation4 + $0xd0] sm:$0xff]
    %v152 = vld [vmem:[#allocation4 + $0xd8] sm:$0xff]
    %v153 = vld [vmem:[#allocation4 + $0xe0] sm:$0xff]
    %v154 = vld [vmem:[#allocation4 + $0xe8] sm:$0xff]
    %v155 = vld [vmem:[#allocation4 + $0xf0] sm:$0xff]
    %v156 = vld [vmem:[#allocation4 + $0xf8] sm:$0xff]
    %v157 = vld [vmem:[#allocation4 + $0x100] sm:$0xff]
    %v158 = vld [vmem:[#allocation4 + $0x108] sm:$0xff]
    %v159 = vld [vmem:[#allocation4 + $0x110] sm:$0xff]
    %v160 = vld [vmem:[#allocation4 + $0x118] sm:$0xff]
    %v161 = vld [vmem:[#allocation4 + $0x120] sm:$0xff]
    %v162 = vld [vmem:[#allocation4 + $0x128] sm:$0xff]
    %v163 = vld [vmem:[#allocation4 + $0x130] sm:$0xff]
    %v164 = vld [vmem:[#allocation4 + $0x138] sm:$0xff]
    %v165 = vld [vmem:[#allocation4 + $0x140] sm:$0xff]
    %v166 = vld [vmem:[#allocation4 + $0x148] sm:$0xff]
    %v167 = vld [vmem:[#allocation4 + $0x150] sm:$0xff]
    %v168 = vld [vmem:[#allocation4 + $0x158] sm:$0xff]
    %v169 = vld [vmem:[#allocation4 + $0x160] sm:$0xff]
    %v170 = vld [vmem:[#allocation4 + $0x168] sm:$0xff]
    %v171 = vld [vmem:[#allocation4 + $0x170] sm:$0xff]
    %v172 = vld [vmem:[#allocation4 + $0x178] sm:$0xff]
    %v173 = vld [vmem:[#allocation4 + $0x180] sm:$0xff]
    %v174 = vld [vmem:[#allocation4 + $0x188] sm:$0xff]
    %v175 = vld [vmem:[#allocation4 + $0x190] sm:$0xff]
    %v176 = vld [vmem:[#allocation4 + $0x198] sm:$0xff]
    %v177 = vld [vmem:[#allocation4 + $0x1a0] sm:$0xff]
    %v178 = vld [vmem:[#allocation4 + $0x1a8] sm:$0xff]
    %v179 = vld [vmem:[#allocation4 + $0x1b0] sm:$0xff]
    %v180 = vld [vmem:[#allocation4 + $0x1b8] sm:$0xff]
    %v181 = vld [vmem:[#allocation4 + $0x1c0] sm:$0xff]
    %v182 = vld [vmem:[#allocation4 + $0x1c8] sm:$0xff]
    %v183 = vld [vmem:[#allocation4 + $0x1d0] sm:$0xff]
    %v184 = vld [vmem:[#allocation4 + $0x1d8] sm:$0xff]
    %v185 = vld [vmem:[#allocation4 + $0x1e0] sm:$0xff]
    %v186 = vld [vmem:[#allocation4 + $0x1e8] sm:$0xff]
    %v187 = vld [vmem:[#allocation4 + $0x1f0] sm:$0xff]
    %v188 = vld [vmem:[#allocation4 + $0x1f8] sm:$0xff]
    %v189 = vld [vmem:[#allocation4 + $0x200] sm:$0xff]
    %v190 = vld [vmem:[#allocation4 + $0x208] sm:$0xff]
    %v191 = vld [vmem:[#allocation4 + $0x210] sm:$0xff]
    %v192 = vld [vmem:[#allocation4 + $0x218] sm:$0xff]
    %v193 = vld [vmem:[#allocation4 + $0x220] sm:$0xff]
    %v194 = vld [vmem:[#allocation4 + $0x228] sm:$0xff]
    %v195 = vld [vmem:[#allocation4 + $0x230] sm:$0xff]
    %v196 = vld [vmem:[#allocation4 + $0x238] sm:$0xff]
    %v197 = vld [vmem:[#allocation4 + $0x240] sm:$0xff]
    %v198 = vld [vmem:[#allocation4 + $0x248] sm:$0xff]
    %v199 = vld [vmem:[#allocation4 + $0x250] sm:$0xff]
    %v200 = vld [vmem:[#allocation4 + $0x258] sm:$0xff]
    %v201 = vld [vmem:[#allocation4 + $0x260] sm:$0xff]
    %v202 = vld [vmem:[#allocation4 + $0x268] sm:$0xff]
    %v203 = vld [vmem:[#allocation4 + $0x270] sm:$0xff]
    %v204 = vld [vmem:[#allocation4 + $0x278] sm:$0xff]
    %v205 = vld [vmem:[#allocation4 + $0x280] sm:$0xff]
    %v206 = vld [vmem:[#allocation4 + $0x288] sm:$0xff]
    %v207 = vld [vmem:[#allocation4 + $0x290] sm:$0xff]
    %v208 = vld [vmem:[#allocation4 + $0x298] sm:$0xff]
    %v209 = vld [vmem:[#allocation4 + $0x2a0] sm:$0xff]
    %v210 = vld [vmem:[#allocation4 + $0x2a8] sm:$0xff]
    %v211 = vld [vmem:[#allocation4 + $0x2b0] sm:$0xff]
    %v212 = vld [vmem:[#allocation4 + $0x2b8] sm:$0xff]
    %v213 = vld [vmem:[#allocation4 + $0x2c0] sm:$0xff]
    %v214 = vld [vmem:[#allocation4 + $0x2c8] sm:$0xff]
    %v215 = vld [vmem:[#allocation4 + $0x2d0] sm:$0xff]
    %v216 = vld [vmem:[#allocation4 + $0x2d8] sm:$0xff]
    %v217 = vld [vmem:[#allocation4 + $0x2e0] sm:$0xff]
    %v218 = vld [vmem:[#allocation4 + $0x2e8] sm:$0xff]
    %v219 = vld [vmem:[#allocation4 + $0x2f0] sm:$0xff]
    %v220 = vld [vmem:[#allocation4 + $0x2f8] sm:$0xff]
    %v221 = vld [vmem:[#allocation4 + $0x300] sm:$0xff]
    %v222 = vld [vmem:[#allocation4 + $0x308] sm:$0xff]
    %v223 = vld [vmem:[%s2] sm:$0x1]
    %v225 = vlaneseq
    %v226 = vshrl.u32 %v225, 7
    %v227 = vsub.s32 0, %v226
    %v228 = vrot.slane %v223, %v227
    %vm230 = vcmask 130048
    %v232 = vsel %vm230, %v124, 0
    %234 = vmatprep.subr.mxu0 0.0
    %235 = vmatpush1.msra.mxu0 %v125
    %236 = vmatprep.subr.mxu0 0.0
    %237 = vmatpush1.msra.mxu0 %v126
    %238 = vmatprep.subr.mxu0 0.0
    %239 = vmatpush1.msra.mxu0 %v127
    %240 = vmatprep.subr.mxu0 0.0
    %241 = vmatpush1.msra.mxu0 %v128
    %242 = vmatprep.subr.mxu0 0.0
    %243 = vmatpush1.msra.mxu0 %v129
    %244 = vmatprep.subr.mxu0 0.0
    %245 = vmatpush1.msra.mxu0 %v130
    %246 = vmatprep.subr.mxu0 0.0
    %247 = vmatpush1.msra.mxu0 %v131
    %248 = vmatprep.subr.mxu0 0.0
    %249 = vmatpush1.msra.mxu0 %v132
    %250 = vmatprep.subr.mxu0 0.0
    %251 = vmatpush1.msra.mxu0 %v133
    %252 = vmatprep.subr.mxu0 0.0
    %253 = vmatpush1.msra.mxu0 %v134
    %254 = vmatprep.subr.mxu0 0.0
    %255 = vmatpush1.msra.mxu0 %v135
    %256 = vmatprep.subr.mxu0 0.0
    %257 = vmatpush1.msra.mxu0 %v136
    %258 = vmatprep.subr.mxu0 0.0
    %259 = vmatpush1.msra.mxu0 %v137
    %260 = vmatprep.subr.mxu0 0.0
    %261 = vmatpush1.msra.mxu0 %v138
    %262 = vmatprep.subr.mxu0 0.0
    %263 = vmatpush1.msra.mxu0 %v139
    %264 = vmatprep.subr.mxu0 0.0
    %265 = vmatpush1.msra.mxu0 %v140
    %266 = vmatprep.subr.mxu0 0.0
    %267 = vmatpush1.msra.mxu0 %v141
    %268 = vmatprep.subr.mxu0 0.0
    %269 = vmatpush1.msra.mxu0 %v142
    %270 = vmatprep.subr.mxu0 0.0
    %271 = vmatpush1.msra.mxu0 %v143
    %272 = vmatprep.subr.mxu0 0.0
    %273 = vmatpush1.msra.mxu0 %v144
    %274 = vmatprep.subr.mxu0 0.0
    %275 = vmatpush1.msra.mxu0 %v145
    %276 = vmatprep.subr.mxu0 0.0
    %277 = vmatpush1.msra.mxu0 %v146
    %278 = vmatprep.subr.mxu0 0.0
    %279 = vmatpush1.msra.mxu0 %v147
    %280 = vmatprep.subr.mxu0 0.0
    %281 = vmatpush1.msra.mxu0 %v148
    %282 = vmatprep.subr.mxu0 0.0
    %283 = vmatpush1.msra.mxu0 %v149
    %284 = vmatprep.subr.mxu0 0.0
    %285 = vmatpush1.msra.mxu0 %v150
    %286 = vmatprep.subr.mxu0 0.0
    %287 = vmatpush1.msra.mxu0 %v151
    %288 = vmatprep.subr.mxu0 0.0
    %289 = vmatpush1.msra.mxu0 %v152
    %290 = vmatprep.subr.mxu0 0.0
    %291 = vmatpush1.msra.mxu0 %v153
    %292 = vmatprep.subr.mxu0 0.0
    %293 = vmatpush1.msra.mxu0 %v154
    %294 = vmatprep.subr.mxu0 0.0
    %295 = vmatpush1.msra.mxu0 %v155
    %296 = vmatprep.subr.mxu0 0.0
    %297 = vmatpush1.msra.mxu0 %v156
    %298 = vmatprep.mubr.f32.mxu0 %v119
    %299 = vmatmul.mubr.f32.gmra.mrb[0].mxu0 %v118
    %v300 = vpop.f32.mrb[0].mxu0
    %v301 = vadd.f32 %v228, %v300
    %v302 = vpop.f32.mrb[0].mxu0
    %303 = vdwg.mxu0
    %304 = vmatprep.subr.mxu0 0.0
    %305 = vmatpush1.msra.mxu0 %v157
    %306 = vmatprep.subr.mxu0 0.0
    %307 = vmatpush1.msra.mxu0 %v158
    %308 = vmatprep.subr.mxu0 0.0
    %309 = vmatpush1.msra.mxu0 %v159
    %310 = vmatprep.subr.mxu0 0.0
    %311 = vmatpush1.msra.mxu0 %v160
    %312 = vmatprep.subr.mxu0 0.0
    %313 = vmatpush1.msra.mxu0 %v161
    %314 = vmatprep.subr.mxu0 0.0
    %315 = vmatpush1.msra.mxu0 %v162
    %316 = vmatprep.subr.mxu0 0.0
    %317 = vmatpush1.msra.mxu0 %v163
    %318 = vmatprep.subr.mxu0 0.0
    %319 = vmatpush1.msra.mxu0 %v164
    %320 = vmatprep.subr.mxu0 0.0
    %321 = vmatpush1.msra.mxu0 %v165
    %322 = vmatprep.subr.mxu0 0.0
    %323 = vmatpush1.msra.mxu0 %v166
    %324 = vmatprep.subr.mxu0 0.0
    %325 = vmatpush1.msra.mxu0 %v167
    %326 = vmatprep.subr.mxu0 0.0
    %327 = vmatpush1.msra.mxu0 %v168
    %328 = vmatprep.subr.mxu0 0.0
    %329 = vmatpush1.msra.mxu0 %v169
    %330 = vmatprep.subr.mxu0 0.0
    %331 = vmatpush1.msra.mxu0 %v170
    %332 = vmatprep.subr.mxu0 0.0
    %333 = vmatpush1.msra.mxu0 %v171
    %334 = vmatprep.subr.mxu0 0.0
    %335 = vmatpush1.msra.mxu0 %v172
    %336 = vmatprep.subr.mxu0 0.0
    %337 = vmatpush1.msra.mxu0 %v173
    %338 = vmatprep.subr.mxu0 0.0
    %339 = vmatpush1.msra.mxu0 %v174
    %340 = vmatprep.subr.mxu0 0.0
    %341 = vmatpush1.msra.mxu0 %v175
    %342 = vmatprep.subr.mxu0 0.0
    %343 = vmatpush1.msra.mxu0 %v176
    %344 = vmatprep.subr.mxu0 0.0
    %345 = vmatpush1.msra.mxu0 %v177
    %346 = vmatprep.subr.mxu0 0.0
    %347 = vmatpush1.msra.mxu0 %v178
    %348 = vmatprep.subr.mxu0 0.0
    %349 = vmatpush1.msra.mxu0 %v179
    %350 = vmatprep.subr.mxu0 0.0
    %351 = vmatpush1.msra.mxu0 %v180
    %352 = vmatprep.subr.mxu0 0.0
    %353 = vmatpush1.msra.mxu0 %v181
    %354 = vmatprep.subr.mxu0 0.0
    %355 = vmatpush1.msra.mxu0 %v182
    %356 = vmatprep.subr.mxu0 0.0
    %357 = vmatpush1.msra.mxu0 %v183
    %358 = vmatprep.subr.mxu0 0.0
    %359 = vmatpush1.msra.mxu0 %v184
    %360 = vmatprep.subr.mxu0 0.0
    %361 = vmatpush1.msra.mxu0 %v185
    %362 = vmatprep.subr.mxu0 0.0
    %363 = vmatpush1.msra.mxu0 %v186
    %364 = vmatprep.subr.mxu0 0.0
    %365 = vmatpush1.msra.mxu0 %v187
    %366 = vmatprep.subr.mxu0 0.0
    %367 = vmatpush1.msra.mxu0 %v188
    %368 = vmatprep.mubr.f32.mxu0 %v121
    %369 = vmatmul.mubr.f32.gmra.mrb[0].mxu0 %v120
    %v370 = vpop.f32.mrb[0].mxu0
    %v371 = vadd.f32 %v301, %v370
    %v372 = vpop.f32.mrb[0].mxu0
    %373 = vdwg.mxu0
    %374 = vmatprep.subr.mxu0 0.0
    %375 = vmatpush1.msra.mxu0 %v189
    %376 = vmatprep.subr.mxu0 0.0
    %377 = vmatpush1.msra.mxu0 %v190
    %378 = vmatprep.subr.mxu0 0.0
    %379 = vmatpush1.msra.mxu0 %v191
    %380 = vmatprep.subr.mxu0 0.0
    %381 = vmatpush1.msra.mxu0 %v192
    %382 = vmatprep.subr.mxu0 0.0
    %383 = vmatpush1.msra.mxu0 %v193
    %384 = vmatprep.subr.mxu0 0.0
    %385 = vmatpush1.msra.mxu0 %v194
    %386 = vmatprep.subr.mxu0 0.0
    %387 = vmatpush1.msra.mxu0 %v195
    %388 = vmatprep.subr.mxu0 0.0
    %389 = vmatpush1.msra.mxu0 %v196
    %390 = vmatprep.subr.mxu0 0.0
    %391 = vmatpush1.msra.mxu0 %v197
    %392 = vmatprep.subr.mxu0 0.0
    %393 = vmatpush1.msra.mxu0 %v198
    %394 = vmatprep.subr.mxu0 0.0
    %395 = vmatpush1.msra.mxu0 %v199
    %396 = vmatprep.subr.mxu0 0.0
    %397 = vmatpush1.msra.mxu0 %v200
    %398 = vmatprep.subr.mxu0 0.0
    %399 = vmatpush1.msra.mxu0 %v201
    %400 = vmatprep.subr.mxu0 0.0
    %401 = vmatpush1.msra.mxu0 %v202
    %402 = vmatprep.subr.mxu0 0.0
    %403 = vmatpush1.msra.mxu0 %v203
    %404 = vmatprep.subr.mxu0 0.0
    %405 = vmatpush1.msra.mxu0 %v204
    %406 = vmatprep.subr.mxu0 0.0
    %407 = vmatpush1.msra.mxu0 %v205
    %408 = vmatprep.subr.mxu0 0.0
    %409 = vmatpush1.msra.mxu0 %v206
    %410 = vmatprep.subr.mxu0 0.0
    %411 = vmatpush1.msra.mxu0 %v207
    %412 = vmatprep.subr.mxu0 0.0
    %413 = vmatpush1.msra.mxu0 %v208
    %414 = vmatprep.subr.mxu0 0.0
    %415 = vmatpush1.msra.mxu0 %v209
    %416 = vmatprep.subr.mxu0 0.0
    %417 = vmatpush1.msra.mxu0 %v210
    %418 = vmatprep.subr.mxu0 0.0
    %419 = vmatpush1.msra.mxu0 %v211
    %420 = vmatprep.subr.mxu0 0.0
    %421 = vmatpush1.msra.mxu0 %v212
    %422 = vmatprep.subr.mxu0 0.0
    %423 = vmatpush1.msra.mxu0 %v213
    %424 = vmatprep.subr.mxu0 0.0
    %425 = vmatpush1.msra.mxu0 %v214
    %426 = vmatprep.subr.mxu0 0.0
    %427 = vmatpush1.msra.mxu0 %v215
    %428 = vmatprep.subr.mxu0 0.0
    %429 = vmatpush1.msra.mxu0 %v216
    %430 = vmatprep.subr.mxu0 0.0
    %431 = vmatpush1.msra.mxu0 %v217
    %432 = vmatprep.subr.mxu0 0.0
    %433 = vmatpush1.msra.mxu0 %v218
    %434 = vmatprep.subr.mxu0 0.0
    %435 = vmatpush1.msra.mxu0 %v219
    %436 = vmatprep.subr.mxu0 0.0
    %437 = vmatpush1.msra.mxu0 %v220
    %438 = vmatprep.mubr.f32.mxu0 %v123
    %439 = vmatmul.mubr.f32.gmra.mrb[0].mxu0 %v122
    %v440 = vpop.f32.mrb[0].mxu0
    %v441 = vadd.f32 %v371, %v440
    %v442 = vpop.f32.mrb[0].mxu0
    %443 = vdwg.mxu0
    %444 = vmatprep.subr.mxu0 0.0
    %445 = vmatpush1.msra.mxu0 %v221
    %446 = vmatprep.subr.mxu0 0.0
    %447 = vmatpush1.msra.mxu0 %v222
    %448 = vmatprep.subr.mxu0 0.0
    %449 = vmatpush1.msra.mxu0 0.0
    %450 = vmatprep.subr.mxu0 0.0
    %451 = vmatpush1.msra.mxu0 0.0
    %452 = vmatprep.subr.mxu0 0.0
    %453 = vmatpush1.msra.mxu0 0.0
    %454 = vmatprep.subr.mxu0 0.0
    %455 = vmatpush1.msra.mxu0 0.0
    %456 = vmatprep.subr.mxu0 0.0
    %457 = vmatpush1.msra.mxu0 0.0
    %458 = vmatprep.subr.mxu0 0.0
    %459 = vmatpush1.msra.mxu0 0.0
    %460 = vmatprep.subr.mxu0 0.0
    %461 = vmatpush1.msra.mxu0 0.0
    %462 = vmatprep.subr.mxu0 0.0
    %463 = vmatpush1.msra.mxu0 0.0
    %464 = vmatprep.subr.mxu0 0.0
    %465 = vmatpush1.msra.mxu0 0.0
    %466 = vmatprep.subr.mxu0 0.0
    %467 = vmatpush1.msra.mxu0 0.0
    %468 = vmatprep.subr.mxu0 0.0
    %469 = vmatpush1.msra.mxu0 0.0
    %470 = vmatprep.subr.mxu0 0.0
    %471 = vmatpush1.msra.mxu0 0.0
    %472 = vmatprep.subr.mxu0 0.0
    %473 = vmatpush1.msra.mxu0 0.0
    %474 = vmatprep.subr.mxu0 0.0
    %475 = vmatpush1.msra.mxu0 0.0
    %476 = vmatprep.subr.mxu0 0.0
    %477 = vmatpush1.msra.mxu0 0.0
    %478 = vmatprep.subr.mxu0 0.0
    %479 = vmatpush1.msra.mxu0 0.0
    %480 = vmatprep.subr.mxu0 0.0
    %481 = vmatpush1.msra.mxu0 0.0
    %482 = vmatprep.subr.mxu0 0.0
    %483 = vmatpush1.msra.mxu0 0.0
    %484 = vmatprep.subr.mxu0 0.0
    %485 = vmatpush1.msra.mxu0 0.0
    %486 = vmatprep.subr.mxu0 0.0
    %487 = vmatpush1.msra.mxu0 0.0
    %488 = vmatprep.subr.mxu0 0.0
    %489 = vmatpush1.msra.mxu0 0.0
    %490 = vmatprep.subr.mxu0 0.0
    %491 = vmatpush1.msra.mxu0 0.0
    %492 = vmatprep.subr.mxu0 0.0
    %493 = vmatpush1.msra.mxu0 0.0
    %494 = vmatprep.subr.mxu0 0.0
    %495 = vmatpush1.msra.mxu0 0.0
    %496 = vmatprep.subr.mxu0 0.0
    %497 = vmatpush1.msra.mxu0 0.0
    %498 = vmatprep.subr.mxu0 0.0
    %499 = vmatpush1.msra.mxu0 0.0
    %500 = vmatprep.subr.mxu0 0.0
    %501 = vmatpush1.msra.mxu0 0.0
    %502 = vmatprep.subr.mxu0 0.0
    %503 = vmatpush1.msra.mxu0 0.0
    %504 = vmatprep.subr.mxu0 0.0
    %505 = vmatpush1.msra.mxu0 0.0
    %506 = vmatprep.subr.mxu0 0.0
    %507 = vmatpush1.msra.mxu0 0.0
    %508 = vmatprep.mubr.f32.mxu0 0.0
    %509 = vmatmul.mubr.f32.gmra.mrb[0].mxu0 %v232
    %v510 = vpop.f32.mrb[0].mxu0
    %v511 = vadd.f32 %v441, %v510
    %v512 = vpop.f32.mrb[0].mxu0
    %513 = vdwg.mxu0
    %514 = vst [vmem:[%s11] sm:$0xff] %v511
    %v515 = vmax.f32 %v511, 0.0
    %v516 = vld [vmem:[#allocation6] sm:$0xff]
    %v517 = vld [vmem:[#allocation6 + $0x8] sm:$0xff]
    %v518 = vld [vmem:[#allocation6 + $0x10] sm:$0xff]
    %v519 = vld [vmem:[#allocation6 + $0x18] sm:$0xff]
    %v520 = vld [vmem:[#allocation6 + $0x20] sm:$0xff]
    %v521 = vld [vmem:[#allocation6 + $0x28] sm:$0xff]
    %v522 = vld [vmem:[#allocation6 + $0x30] sm:$0xff]
    %v523 = vld [vmem:[#allocation6 + $0x38] sm:$0xff]
    %v524 = vld [vmem:[#allocation6 + $0x40] sm:$0xff]
    %v525 = vld [vmem:[#allocation6 + $0x48] sm:$0xff]
    %v526 = vld [vmem:[#allocation6 + $0x50] sm:$0xff]
    %v527 = vld [vmem:[#allocation6 + $0x58] sm:$0xff]
    %v528 = vld [vmem:[#allocation6 + $0x60] sm:$0xff]
    %v529 = vld [vmem:[#allocation6 + $0x68] sm:$0xff]
    %v530 = vld [vmem:[#allocation6 + $0x70] sm:$0xff]
    %v531 = vld [vmem:[#allocation6 + $0x78] sm:$0xff]
    %v532 = vld [vmem:[%s4] sm:$0x1]
    %v534 = vlaneseq
    %v535 = vshrl.u32 %v534, 7
    %v536 = vsub.s32 0, %v535
    %v537 = vrot.slane %v532, %v536
    %539 = vmatprep.subr.mxu0 0.0
    %540 = vmatpush1.msra.mxu0 %v516
    %541 = vmatprep.subr.mxu0 0.0
    %542 = vmatpush1.msra.mxu0 %v517
    %543 = vmatprep.subr.mxu0 0.0
    %544 = vmatpush1.msra.mxu0 %v518
    %545 = vmatprep.subr.mxu0 0.0
    %546 = vmatpush1.msra.mxu0 %v519
    %547 = vmatprep.subr.mxu0 0.0
    %548 = vmatpush1.msra.mxu0 %v520
    %549 = vmatprep.subr.mxu0 0.0
    %550 = vmatpush1.msra.mxu0 %v521
    %551 = vmatprep.subr.mxu0 0.0
    %552 = vmatpush1.msra.mxu0 %v522
    %553 = vmatprep.subr.mxu0 0.0
    %554 = vmatpush1.msra.mxu0 %v523
    %555 = vmatprep.subr.mxu0 0.0
    %556 = vmatpush1.msra.mxu0 %v524
    %557 = vmatprep.subr.mxu0 0.0
    %558 = vmatpush1.msra.mxu0 %v525
    %559 = vmatprep.subr.mxu0 0.0
    %560 = vmatpush1.msra.mxu0 %v526
    %561 = vmatprep.subr.mxu0 0.0
    %562 = vmatpush1.msra.mxu0 %v527
    %563 = vmatprep.subr.mxu0 0.0
    %564 = vmatpush1.msra.mxu0 %v528
    %565 = vmatprep.subr.mxu0 0.0
    %566 = vmatpush1.msra.mxu0 %v529
    %567 = vmatprep.subr.mxu0 0.0
    %568 = vmatpush1.msra.mxu0 %v530
    %569 = vmatprep.subr.mxu0 0.0
    %570 = vmatpush1.msra.mxu0 %v531
    %571 = vmatprep.subr.mxu0 0.0
    %572 = vmatpush1.msra.mxu0 0.0
    %573 = vmatprep.subr.mxu0 0.0
    %574 = vmatpush1.msra.mxu0 0.0
    %575 = vmatprep.subr.mxu0 0.0
    %576 = vmatpush1.msra.mxu0 0.0
    %577 = vmatprep.subr.mxu0 0.0
    %578 = vmatpush1.msra.mxu0 0.0
    %579 = vmatprep.subr.mxu0 0.0
    %580 = vmatpush1.msra.mxu0 0.0
    %581 = vmatprep.subr.mxu0 0.0
    %582 = vmatpush1.msra.mxu0 0.0
    %583 = vmatprep.subr.mxu0 0.0
    %584 = vmatpush1.msra.mxu0 0.0
    %585 = vmatprep.subr.mxu0 0.0
    %586 = vmatpush1.msra.mxu0 0.0
    %587 = vmatprep.subr.mxu0 0.0
    %588 = vmatpush1.msra.mxu0 0.0
    %589 = vmatprep.subr.mxu0 0.0
    %590 = vmatpush1.msra.mxu0 0.0
    %591 = vmatprep.subr.mxu0 0.0
    %592 = vmatpush1.msra.mxu0 0.0
    %593 = vmatprep.subr.mxu0 0.0
    %594 = vmatpush1.msra.mxu0 0.0
    %595 = vmatprep.subr.mxu0 0.0
    %596 = vmatpush1.msra.mxu0 0.0
    %597 = vmatprep.subr.mxu0 0.0
    %598 = vmatpush1.msra.mxu0 0.0
    %599 = vmatprep.subr.mxu0 0.0
    %600 = vmatpush1.msra.mxu0 0.0
    %601 = vmatprep.subr.mxu0 0.0
    %602 = vmatpush1.msra.mxu0 0.0
    %603 = vmatprep.mubr.f32.mxu0 0.0
    %604 = vmatmul.mubr.f32.gmra.mrb[0].mxu0 %v515
    %v605 = vpop.f32.mrb[0].mxu0
    %v606 = vadd.f32 %v537, %v605
    %v607 = vpop.f32.mrb[0].mxu0
    %608 = vdwg.mxu0
    %609 = vst [vmem:[%s11 + $0x8] sm:$0xff] %v606
    %v610 = vmax.f32 %v606, 0.0
    %v611 = vld [vmem:[#allocation7] sm:$0xff]
    %v612 = vld [vmem:[#allocation7 + $0x8] sm:$0xff]
    %v613 = vld [vmem:[#allocation7 + $0x10] sm:$0xff]
    %v614 = vld [vmem:[#allocation7 + $0x18] sm:$0xff]
    %v615 = vld [vmem:[#allocation7 + $0x20] sm:$0xff]
    %v616 = vld [vmem:[#allocation7 + $0x28] sm:$0xff]
    %v617 = vld [vmem:[#allocation7 + $0x30] sm:$0xff]
    %v618 = vld [vmem:[#allocation7 + $0x38] sm:$0xff]
    %v619 = vld [vmem:[#allocation7 + $0x40] sm:$0xff]
    %v620 = vld [vmem:[#allocation7 + $0x48] sm:$0xff]
    %v621 = vld [vmem:[#allocation7 + $0x50] sm:$0xff]
    %v622 = vld [vmem:[#allocation7 + $0x58] sm:$0xff]
    %v623 = vld [vmem:[#allocation7 + $0x60] sm:$0xff]
    %v624 = vld [vmem:[#allocation7 + $0x68] sm:$0xff]
    %v625 = vld [vmem:[#allocation7 + $0x70] sm:$0xff]
    %v626 = vld [vmem:[#allocation7 + $0x78] sm:$0xff]
    %v627 = vld [vmem:[%s6] sm:$0x1]
    %v629 = vlaneseq
    %v630 = vshrl.u32 %v629, 7
    %v631 = vsub.s32 0, %v630
    %v632 = vrot.slane %v627, %v631
    %634 = vmatprep.subr.mxu0 0.0
    %635 = vmatpush1.msra.mxu0 %v611
    %636 = vmatprep.subr.mxu0 0.0
    %637 = vmatpush1.msra.mxu0 %v612
    %638 = vmatprep.subr.mxu0 0.0
    %639 = vmatpush1.msra.mxu0 %v613
    %640 = vmatprep.subr.mxu0 0.0
    %641 = vmatpush1.msra.mxu0 %v614
    %642 = vmatprep.subr.mxu0 0.0
    %643 = vmatpush1.msra.mxu0 %v615
    %644 = vmatprep.subr.mxu0 0.0
    %645 = vmatpush1.msra.mxu0 %v616
    %646 = vmatprep.subr.mxu0 0.0
    %647 = vmatpush1.msra.mxu0 %v617
    %648 = vmatprep.subr.mxu0 0.0
    %649 = vmatpush1.msra.mxu0 %v618
    %650 = vmatprep.subr.mxu0 0.0
    %651 = vmatpush1.msra.mxu0 %v619
    %652 = vmatprep.subr.mxu0 0.0
    %653 = vmatpush1.msra.mxu0 %v620
    %654 = vmatprep.subr.mxu0 0.0
    %655 = vmatpush1.msra.mxu0 %v621
    %656 = vmatprep.subr.mxu0 0.0
    %657 = vmatpush1.msra.mxu0 %v622
    %658 = vmatprep.subr.mxu0 0.0
    %659 = vmatpush1.msra.mxu0 %v623
    %660 = vmatprep.subr.mxu0 0.0
    %661 = vmatpush1.msra.mxu0 %v624
    %662 = vmatprep.subr.mxu0 0.0
    %663 = vmatpush1.msra.mxu0 %v625
    %664 = vmatprep.subr.mxu0 0.0
    %665 = vmatpush1.msra.mxu0 %v626
    %666 = vmatprep.subr.mxu0 0.0
    %667 = vmatpush1.msra.mxu0 0.0
    %668 = vmatprep.subr.mxu0 0.0
    %669 = vmatpush1.msra.mxu0 0.0
    %670 = vmatprep.subr.mxu0 0.0
    %671 = vmatpush1.msra.mxu0 0.0
    %672 = vmatprep.subr.mxu0 0.0
    %673 = vmatpush1.msra.mxu0 0.0
    %674 = vmatprep.subr.mxu0 0.0
    %675 = vmatpush1.msra.mxu0 0.0
    %676 = vmatprep.subr.mxu0 0.0
    %677 = vmatpush1.msra.mxu0 0.0
    %678 = vmatprep.subr.mxu0 0.0
    %679 = vmatpush1.msra.mxu0 0.0
    %680 = vmatprep.subr.mxu0 0.0
    %681 = vmatpush1.msra.mxu0 0.0
    %682 = vmatprep.subr.mxu0 0.0
    %683 = vmatpush1.msra.mxu0 0.0
    %684 = vmatprep.subr.mxu0 0.0
    %685 = vmatpush1.msra.mxu0 0.0
    %686 = vmatprep.subr.mxu0 0.0
    %687 = vmatpush1.msra.mxu0 0.0
    %688 = vmatprep.subr.mxu0 0.0
    %689 = vmatpush1.msra.mxu0 0.0
    %690 = vmatprep.subr.mxu0 0.0
    %691 = vmatpush1.msra.mxu0 0.0
    %692 = vmatprep.subr.mxu0 0.0
    %693 = vmatpush1.msra.mxu0 0.0
    %694 = vmatprep.subr.mxu0 0.0
    %695 = vmatpush1.msra.mxu0 0.0
    %696 = vmatprep.subr.mxu0 0.0
    %697 = vmatpush1.msra.mxu0 0.0
    %698 = vmatprep.mubr.f32.mxu0 0.0
    %699 = vmatmul.mubr.f32.gmra.mrb[0].mxu0 %v610
    %v700 = vpop.f32.mrb[0].mxu0
    %v701 = vadd.f32 %v632, %v700
    %v702 = vpop.f32.mrb[0].mxu0
    %703 = vdwg.mxu0
    %704 = vst [vmem:[%s11 + $0x10] sm:$0xff] %v701
    %v705 = vmax.f32 %v701, 0.0
    %v706 = vld [vmem:[#allocation9] sm:$0xff]
    %v707 = vld [vmem:[#allocation9 + $0x8] sm:$0xff]
    %v708 = vld [vmem:[#allocation9 + $0x10] sm:$0xff]
    %v709 = vld [vmem:[#allocation9 + $0x18] sm:$0xff]
    %v710 = vld [vmem:[#allocation9 + $0x20] sm:$0xff]
    %v711 = vld [vmem:[#allocation9 + $0x28] sm:$0xff]
    %v712 = vld [vmem:[#allocation9 + $0x30] sm:$0xff]
    %v713 = vld [vmem:[#allocation9 + $0x38] sm:$0xff]
    %v714 = vld [vmem:[#allocation9 + $0x40] sm:$0xff]
    %v715 = vld [vmem:[#allocation9 + $0x48] sm:$0xff]
    %v716 = vld [vmem:[#allocation9 + $0x50] sm:$0xff]
    %v717 = vld [vmem:[#allocation9 + $0x58] sm:$0xff]
    %v718 = vld [vmem:[#allocation9 + $0x60] sm:$0xff]
    %v719 = vld [vmem:[#allocation9 + $0x68] sm:$0xff]
    %v720 = vld [vmem:[#allocation9 + $0x70] sm:$0xff]
    %v721 = vld [vmem:[#allocation9 + $0x78] sm:$0xff]
    %v722 = vld [vmem:[%s8] sm:$0x1]
    %v724 = vlaneseq
    %v725 = vshrl.u32 %v724, 7
    %v726 = vsub.s32 0, %v725
    %v727 = vrot.slane %v722, %v726
    %729 = vmatprep.subr.mxu0 0.0
    %730 = vmatpush1.msra.mxu0 %v706
    %731 = vmatprep.subr.mxu0 0.0
    %732 = vmatpush1.msra.mxu0 %v707
    %733 = vmatprep.subr.mxu0 0.0
    %734 = vmatpush1.msra.mxu0 %v708
    %735 = vmatprep.subr.mxu0 0.0
    %736 = vmatpush1.msra.mxu0 %v709
    %737 = vmatprep.subr.mxu0 0.0
    %738 = vmatpush1.msra.mxu0 %v710
    %739 = vmatprep.subr.mxu0 0.0
    %740 = vmatpush1.msra.mxu0 %v711
    %741 = vmatprep.subr.mxu0 0.0
    %742 = vmatpush1.msra.mxu0 %v712
    %743 = vmatprep.subr.mxu0 0.0
    %744 = vmatpush1.msra.mxu0 %v713
    %745 = vmatprep.subr.mxu0 0.0
    %746 = vmatpush1.msra.mxu0 %v714
    %747 = vmatprep.subr.mxu0 0.0
    %748 = vmatpush1.msra.mxu0 %v715
    %749 = vmatprep.subr.mxu0 0.0
    %750 = vmatpush1.msra.mxu0 %v716
    %751 = vmatprep.subr.mxu0 0.0
    %752 = vmatpush1.msra.mxu0 %v717
    %753 = vmatprep.subr.mxu0 0.0
    %754 = vmatpush1.msra.mxu0 %v718
    %755 = vmatprep.subr.mxu0 0.0
    %756 = vmatpush1.msra.mxu0 %v719
    %757 = vmatprep.subr.mxu0 0.0
    %758 = vmatpush1.msra.mxu0 %v720
    %759 = vmatprep.subr.mxu0 0.0
    %760 = vmatpush1.msra.mxu0 %v721
    %761 = vmatprep.subr.mxu0 0.0
    %762 = vmatpush1.msra.mxu0 0.0
    %763 = vmatprep.subr.mxu0 0.0
    %764 = vmatpush1.msra.mxu0 0.0
    %765 = vmatprep.subr.mxu0 0.0
    %766 = vmatpush1.msra.mxu0 0.0
    %767 = vmatprep.subr.mxu0 0.0
    %768 = vmatpush1.msra.mxu0 0.0
    %769 = vmatprep.subr.mxu0 0.0
    %770 = vmatpush1.msra.mxu0 0.0
    %771 = vmatprep.subr.mxu0 0.0
    %772 = vmatpush1.msra.mxu0 0.0
    %773 = vmatprep.subr.mxu0 0.0
    %774 = vmatpush1.msra.mxu0 0.0
    %775 = vmatprep.subr.mxu0 0.0
    %776 = vmatpush1.msra.mxu0 0.0
    %777 = vmatprep.subr.mxu0 0.0
    %778 = vmatpush1.msra.mxu0 0.0
    %779 = vmatprep.subr.mxu0 0.0
    %780 = vmatpush1.msra.mxu0 0.0
    %781 = vmatprep.subr.mxu0 0.0
    %782 = vmatpush1.msra.mxu0 0.0
    %783 = vmatprep.subr.mxu0 0.0
    %784 = vmatpush1.msra.mxu0 0.0
    %785 = vmatprep.subr.mxu0 0.0
    %786 = vmatpush1.msra.mxu0 0.0
    %787 = vmatprep.subr.mxu0 0.0
    %788 = vmatpush1.msra.mxu0 0.0
    %789 = vmatprep.subr.mxu0 0.0
    %790 = vmatpush1.msra.mxu0 0.0
    %791 = vmatprep.subr.mxu0 0.0
    %792 = vmatpush1.msra.mxu0 0.0
    %793 = vmatprep.mubr.f32.mxu0 0.0
    %794 = vmatmul.mubr.f32.gmra.mrb[0].mxu0 %v705
    %v795 = vpop.f32.mrb[0].mxu0
    %v796 = vadd.f32 %v727, %v795
    %v797 = vpop.f32.mrb[0].mxu0
    %798 = vdwg.mxu0
    %799 = vst [vmem:[%s11 + $0x18] sm:$0xff] %v796
    %v800 = vmax.f32 %v796, 0.0
    %v801 = vld [vmem:[#allocation10] sm:$0xff]
    %v802 = vld [vmem:[#allocation10 + $0x8] sm:$0xff]
    %v803 = vld [vmem:[#allocation10 + $0x10] sm:$0xff]
    %v804 = vld [vmem:[#allocation10 + $0x18] sm:$0xff]
    %v805 = vld [vmem:[#allocation10 + $0x20] sm:$0xff]
    %v806 = vld [vmem:[#allocation10 + $0x28] sm:$0xff]
    %v807 = vld [vmem:[#allocation10 + $0x30] sm:$0xff]
    %v808 = vld [vmem:[#allocation10 + $0x38] sm:$0xff]
    %v809 = vld [vmem:[#allocation10 + $0x40] sm:$0xff]
    %v810 = vld [vmem:[#allocation10 + $0x48] sm:$0xff]
    %v811 = vld [vmem:[#allocation10 + $0x50] sm:$0xff]
    %v812 = vld [vmem:[#allocation10 + $0x58] sm:$0xff]
    %v813 = vld [vmem:[#allocation10 + $0x60] sm:$0xff]
    %v814 = vld [vmem:[#allocation10 + $0x68] sm:$0xff]
    %v815 = vld [vmem:[#allocation10 + $0x70] sm:$0xff]
    %v816 = vld [vmem:[#allocation10 + $0x78] sm:$0xff]
    %v817 = vld [vmem:[%s10] sm:$0x1]
    %v819 = vlaneseq
    %v820 = vshrl.u32 %v819, 7
    %v821 = vsub.s32 0, %v820
    %v822 = vrot.slane %v817, %v821
    %824 = vmatprep.subr.mxu0 0.0
    %825 = vmatpush1.msra.mxu0 %v801
    %826 = vmatprep.subr.mxu0 0.0
    %827 = vmatpush1.msra.mxu0 %v802
    %828 = vmatprep.subr.mxu0 0.0
    %829 = vmatpush1.msra.mxu0 %v803
    %830 = vmatprep.subr.mxu0 0.0
    %831 = vmatpush1.msra.mxu0 %v804
    %832 = vmatprep.subr.mxu0 0.0
    %833 = vmatpush1.msra.mxu0 %v805
    %834 = vmatprep.subr.mxu0 0.0
    %835 = vmatpush1.msra.mxu0 %v806
    %836 = vmatprep.subr.mxu0 0.0
    %837 = vmatpush1.msra.mxu0 %v807
    %838 = vmatprep.subr.mxu0 0.0
    %839 = vmatpush1.msra.mxu0 %v808
    %840 = vmatprep.subr.mxu0 0.0
    %841 = vmatpush1.msra.mxu0 %v809
    %842 = vmatprep.subr.mxu0 0.0
    %843 = vmatpush1.msra.mxu0 %v810
    %844 = vmatprep.subr.mxu0 0.0
    %845 = vmatpush1.msra.mxu0 %v811
    %846 = vmatprep.subr.mxu0 0.0
    %847 = vmatpush1.msra.mxu0 %v812
    %848 = vmatprep.subr.mxu0 0.0
    %849 = vmatpush1.msra.mxu0 %v813
    %850 = vmatprep.subr.mxu0 0.0
    %851 = vmatpush1.msra.mxu0 %v814
    %852 = vmatprep.subr.mxu0 0.0
    %853 = vmatpush1.msra.mxu0 %v815
    %854 = vmatprep.subr.mxu0 0.0
    %855 = vmatpush1.msra.mxu0 %v816
    %856 = vmatprep.subr.mxu0 0.0
    %857 = vmatpush1.msra.mxu0 0.0
    %858 = vmatprep.subr.mxu0 0.0
    %859 = vmatpush1.msra.mxu0 0.0
    %860 = vmatprep.subr.mxu0 0.0
    %861 = vmatpush1.msra.mxu0 0.0
    %862 = vmatprep.subr.mxu0 0.0
    %863 = vmatpush1.msra.mxu0 0.0
    %864 = vmatprep.subr.mxu0 0.0
    %865 = vmatpush1.msra.mxu0 0.0
    %866 = vmatprep.subr.mxu0 0.0
    %867 = vmatpush1.msra.mxu0 0.0
    %868 = vmatprep.subr.mxu0 0.0
    %869 = vmatpush1.msra.mxu0 0.0
    %870 = vmatprep.subr.mxu0 0.0
    %871 = vmatpush1.msra.mxu0 0.0
    %872 = vmatprep.subr.mxu0 0.0
    %873 = vmatpush1.msra.mxu0 0.0
    %874 = vmatprep.subr.mxu0 0.0
    %875 = vmatpush1.msra.mxu0 0.0
    %876 = vmatprep.subr.mxu0 0.0
    %877 = vmatpush1.msra.mxu0 0.0
    %878 = vmatprep.subr.mxu0 0.0
    %879 = vmatpush1.msra.mxu0 0.0
    %880 = vmatprep.subr.mxu0 0.0
    %881 = vmatpush1.msra.mxu0 0.0
    %882 = vmatprep.subr.mxu0 0.0
    %883 = vmatpush1.msra.mxu0 0.0
    %884 = vmatprep.subr.mxu0 0.0
    %885 = vmatpush1.msra.mxu0 0.0
    %886 = vmatprep.subr.mxu0 0.0
    %887 = vmatpush1.msra.mxu0 0.0
    %888 = vmatprep.mubr.f32.mxu0 0.0
    %889 = vmatmul.mubr.f32.gmra.mrb[0].mxu0 %v800
    %v890 = vpop.f32.mrb[0].mxu0
    %v891 = vadd.f32 %v822, %v890
    %v892 = vpop.f32.mrb[0].mxu0
    %893 = vdwg.mxu0
    %894 = vst [vmem:[%s11 + $0x20] sm:$0xff] %v891
    // Predicated region
    $region70: #{pt_mlp_forward.1} parent=1 // pred_check
      _
    $region71: #{pt_mlp_forward.1} parent=1 // pred_check_branch
      %896 = sbr.rel (0) target = $region73
    $region72: #{pt_mlp_forward.1} parent=1 // pred_region
      _
    $region73: #{pt_mlp_forward.1} parent=1 // pred_fallthru
      _
    // Predicated region
    $region74: #{pt_mlp_forward.1} parent=1 // pred_check
      _
    $region75: #{pt_mlp_forward.1} parent=1 // pred_check_branch
      %898 = sbr.rel (0) target = $region77
    $region76: #{pt_mlp_forward.1} parent=1 // pred_region
      _
    $region77: #{pt_mlp_forward.1} parent=1 // pred_fallthru
      _
    %899 = vsyncpa [#allocation3], 1
    %900 = vsyncpa [#allocation5], 1
    %901 = vsyncpa [#allocation8], 1
    %902 = vsyncpa [#allocation11], 1

</llo_original>
